<compile_context>
chip_gen: v5e
topology: v5e:2x2
jax: 0.10.0
libtpu: 0.0.40
codegen_flags: <defaults>
</compile_context>

<pallas_src>
import functools
import math

import jax
import jax.numpy as jnp
import numpy as np
from jax.experimental import pallas as pl
from jax.experimental.pallas import tpu as pltpu

_MIB = 1 << 20


def _round_up(x, m):
    return (x + m - 1) // m * m


def _sinusoid_table(n_pos, d_model):
    """PE table identical to the PyTorch module (trace-time numpy constant)."""
    pos = np.arange(n_pos, dtype=np.float32)[:, None]
    div = np.exp(np.arange(0, d_model, 2, dtype=np.float32)
                 * (-math.log(10000.0) / d_model))
    ang = pos * div                                      # (n_pos, d_model // 2)
    pe = np.stack([np.sin(ang), np.cos(ang)], axis=-1)   # interleave sin / cos
    return pe.reshape(n_pos, d_model).astype(np.float32)


# ----------------------------- kernels --------------------------------------
def _embed_kernel_vpu(x_ref, wv_ref, add_ref, o_ref, *, seg_len):
    """out[g,s,:] = sum_k x[g,s,k] * Wv[k,:] + addend[s,:]   (small seg_len).

    Unrolled VPU broadcast-MAC: at K <= ~32 the MXU would be <3% utilized and
    the (bg,s,k)->(bg*s,k) reshape a matmul needs can materialize a VMEM
    relayout; this keeps the vector-extended slot free."""
    y = x_ref[:, :, 0:1] * wv_ref[0, :]
    for k in range(1, seg_len):
        y = y + x_ref[:, :, k:k + 1] * wv_ref[k, :]
    o_ref[...] = (y + add_ref[...]).astype(o_ref.dtype)


def _embed_kernel_mxu(x_ref, wv_ref, add_ref, o_ref):
    """MXU path for larger seg_len: contract axis 2 of the 3-D block directly,
    so no in-kernel reshape is needed."""
    y = jax.lax.dot_general(
        x_ref[...], wv_ref[...],
        dimension_numbers=(((2,), (0,)), ((), ())),
        preferred_element_type=jnp.float32)
    o_ref[...] = (y + add_ref[...]).astype(o_ref.dtype)


# ------------------------- tiling / VMEM budgeting ---------------------------
def _physical_vmem_bytes():
    try:
        return int(pltpu.get_tpu_info().vmem_capacity_bytes)
    except Exception:      # query unavailable -> be conservative (v7x per-TC)
        return 64 * _MIB


def _vmem_block_bytes(shape, itemsize):
    """Conservative VMEM footprint of one block in native tiled layout
    (minor dim padded to 128 lanes, second-minor to the sublane tile)."""
    s = list(shape)
    s[-1] = _round_up(s[-1], 128)
    if len(s) >= 2:
        s[-2] = _round_up(s[-2], max(8, 32 // itemsize))
    n = 1
    for d in s:
        n *= d
    return n * itemsize


def _choose_block_g(G, max_bg):
    """Pick the group-axis block size.

    Prefer (a) a block that divides G exactly (no padding, no post-kernel slice
    that would re-read/re-write the activation) and (b) >= 2 grid steps so both
    v7x TensorCores issue stores."""
    cap = max(1, min(max_bg, G))
    if G >= 2:
        cap = min(cap, -(-G // 2))            # ceil(G/2) -> at least 2 steps
    best = 1
    for bg in range(cap, 0, -1):
        if G % bg == 0:
            best = bg
            break
    if best * 4 >= cap:                       # divisor close enough to budget
        return best, G
    # Fallback (e.g. large prime G): pad G; wrapper slices afterwards.
    return cap, -(-G // cap) * cap


# ------------------------------ wrapper --------------------------------------
def data_embedding_forward(x, x_mark, params, *, seg_len, d_model, max_len=10,
                           out_dtype=jnp.float32):
    """Pallas equivalent of DataEmbedding(seg_len, d_model, ...).forward (eval).

    out_dtype=jnp.bfloat16 halves HBM store traffic (the kernel is store-bound)
    if downstream consumers accept it; default keeps the module's f32."""
    batch, ts_len, ts_dim = x.shape
    assert ts_len % seg_len == 0, "ts_len must be a multiple of seg_len"
    seg_num = ts_len // seg_len
    pe_len = min(ts_len, max_len)     # torch: pe[:, :ts_len] on a max_len table
    if pe_len != seg_num:
        raise NotImplementedError(
            "fused path supports the shape regime where the torch broadcast is "
            "valid with pe rows == seg_num (e.g. seg_len == 1 and ts_len <= max_len)")
    dm = d_model
    d_inp = x_mark.shape[-1]
    xm2 = x_mark.reshape(-1, d_inp)
    assert xm2.shape[0] == seg_num, "x_mark must provide one feature row per segment"

    G, S = batch * ts_dim, seg_num
    dm_pad = _round_up(dm, 128)       # lane-dense output (no-op for d_model=128)

    # --- wrapper-side layout plumbing: DSW rearrange --------------------------
    # 'b (seg_num seg_len) d -> (b d seg_num) seg_len', kept 3D as
    # (G, S, seg_len) so the (S, D) addend broadcasts in-register in the kernel.
    x3 = x.reshape(batch, S, seg_len, ts_dim).transpose(0, 3, 1, 2)
    x3 = x3.reshape(G, S, seg_len)

    # --- fold ALL per-position additive terms into one (S, dm) constant -------
    # (positional table + x_mark @ Wt + bt + bv).  O(S*D) wrapper work, done
    # once; drops 4 kernel inputs and the per-step small MXU push.
    pe = jnp.asarray(_sinusoid_table(pe_len, dm))
    te = jnp.dot(xm2, params["w_time"], precision="highest") + params["b_time"]
    addend = (pe + te + params["b_value"]).astype(jnp.float32)

    wv = params["w_value"].astype(jnp.float32)
    if dm_pad != dm:
        addend = jnp.pad(addend, ((0, 0), (0, dm_pad - dm)))
        wv = jnp.pad(wv, ((0, 0), (0, dm_pad - dm)))

    # --- VMEM-budgeted tiling over the (batch*ts_dim) group axis --------------
    out_itemsize = jnp.dtype(out_dtype).itemsize
    phys_vmem = _physical_vmem_bytes()
    # Double-buffered working-set budget: v7x (64 MiB physical per TC) -> 28 MiB,
    # v5e/v6e (128 MiB) -> 48 MiB. Keeps output blocks in the 8-16 MiB range
    # where store-bound kernels reach ~85% of the HBM roofline.
    ws_budget = 28 * _MIB if phys_vmem <= 64 * _MIB else 48 * _MIB
    per_row = (_vmem_block_bytes((1, S, seg_len), 4)
               + _vmem_block_bytes((1, S, dm_pad), out_itemsize))
    max_bg = max(1, ws_budget // (2 * per_row))
    block_g, G_pad = _choose_block_g(G, max_bg)

    if G_pad != G:
        x3 = jnp.pad(x3, ((0, G_pad - G), (0, 0), (0, 0)))

    const_bytes = (_vmem_block_bytes((seg_len, dm_pad), 4)
                   + _vmem_block_bytes((S, dm_pad), 4))
    vmem_needed = 2 * (block_g * per_row + const_bytes)      # dbl-buffered in+out+consts
    vmem_limit = int(min(phys_vmem * 3 // 4, vmem_needed + 8 * _MIB))

    if seg_len >= 32:
        kernel = _embed_kernel_mxu
    else:
        kernel = functools.partial(_embed_kernel_vpu, seg_len=seg_len)

    out = pl.pallas_call(
        kernel,
        out_shape=jax.ShapeDtypeStruct((G_pad, S, dm_pad), out_dtype),
        grid=(G_pad // block_g,),
        in_specs=[
            pl.BlockSpec((block_g, S, seg_len), lambda i: (i, 0, 0)),  # x segments
            pl.BlockSpec((seg_len, dm_pad), lambda i: (0, 0)),         # value weight
            pl.BlockSpec((S, dm_pad), lambda i: (0, 0)),               # folded addend
        ],
        out_specs=pl.BlockSpec((block_g, S, dm_pad), lambda i: (i, 0, 0)),
        compiler_params=pltpu.CompilerParams(
            dimension_semantics=("parallel",),
            vmem_limit_bytes=vmem_limit),
    )(x3, wv, addend)

    if G_pad != G or dm_pad != dm:
        # Only reached in padded fallback configs (prime G or d_model % 128 != 0);
        # the common path returns the kernel output with zero extra HBM traffic.
        out = out[:G, :, :dm]
    # TODO(synk): nn.Dropout(p) is identity in eval(); training-mode RNG dropout
    # (random mask scaled by 1/(1-p)) is not implemented here.
    return out.reshape(batch, ts_dim, S, dm)


# ------------------------------ reference ------------------------------------
def _reference_forward(x, x_mark, params, *, seg_len, d_model, max_len=10):
    """Pure-JAX mirror of the PyTorch DataEmbedding.forward (eval mode)."""
    batch, ts_len, ts_dim = x.shape
    seg_num = ts_len // seg_len
    xs = x.reshape(batch, seg_num, seg_len, ts_dim).transpose(0, 3, 1, 2)
    xs = xs.reshape(batch * ts_dim * seg_num, seg_len)
    ve = jnp.dot(xs, params["w_value"], precision="highest") + params["b_value"]
    ve = ve.reshape(batch, ts_dim, seg_num, d_model)
    pe = jnp.asarray(_sinusoid_table(max_len, d_model))[None, :ts_len]
    te = jnp.dot(x_mark, params["w_time"], precision="highest") + params["b_time"]
    return ve + pe + te


if __name__ == "__main__":
    key = jax.random.PRNGKey(0)
    # DataEmbedding(seg_len=1, d_model=128, freq='diw', dropout=0.1); shapes
    # chosen so the torch forward's broadcast is valid (seg_num == ts_len <=
    # max_len) and the TPU output is lane-dense (d_model = 128).
    batch, ts_dim, seg_len, d_model, max_len = 2, 4, 1, 128, 10
    seg_num = 8
    ts_len = seg_num * seg_len
    d_inp = 2                                   # freq='diw'
    k1, k2, k3, k4, k5, k6 = jax.random.split(key, 6)
    x = jax.random.normal(k1, (batch, ts_len, ts_dim), dtype=jnp.float32)
    x_mark = jax.random.normal(k2, (1, ts_len, d_inp), dtype=jnp.float32)
    params = {
        # w_* correspond to torch Linear.weight.T, b_* to Linear.bias
        "w_value": jax.random.normal(k3, (seg_len, d_model), jnp.float32)
                   / math.sqrt(seg_len),
        "b_value": 0.02 * jax.random.normal(k4, (d_model,), jnp.float32),
        "w_time": jax.random.normal(k5, (d_inp, d_model), jnp.float32)
                  / math.sqrt(d_inp),
        "b_time": 0.02 * jax.random.normal(k6, (d_model,), jnp.float32),
    }

    fwd = jax.jit(functools.partial(data_embedding_forward,
                                    seg_len=seg_len, d_model=d_model,
                                    max_len=max_len))
    out = jax.block_until_ready(fwd(x, x_mark, params))

    ref = _reference_forward(x, x_mark, params, seg_len=seg_len,
                             d_model=d_model, max_len=max_len)
    assert out.shape == (batch, ts_dim, seg_num, d_model), out.shape
    assert jnp.allclose(out, ref, atol=1e-3, rtol=1e-3), \
        float(jnp.max(jnp.abs(out - ref)))
    print("KERNEL_OK")
</pallas_src>

<mosaic_0001>
module attributes {stable_mosaic.version = 11 : i64} {
  func.func @_embed_kernel_vpu(%arg0: i32, %arg1: memref<4x8x1xf32, #tpu.memory_space<vmem>>, %arg2: memref<1x128xf32, #tpu.memory_space<vmem>>, %arg3: memref<8x128xf32, #tpu.memory_space<vmem>>, %arg4: memref<4x8x128xf32, #tpu.memory_space<vmem>>) attributes {dimension_semantics = [#tpu.dimension_semantics<parallel>], iteration_bounds = array<i64: 2>, scalar_prefetch = 0 : i64, scratch_operands = 0 : i64, tpu.core_type = #tpu.core_type<tc>, window_params = [{transform_indices = @transform_0, window_bounds = array<i64: 4, 8, 1>}, {pipeline_mode = #tpu.pipeline_mode<synchronous>, transform_indices = @transform_1, window_bounds = array<i64: 1, 128>}, {pipeline_mode = #tpu.pipeline_mode<synchronous>, transform_indices = @transform_2, window_bounds = array<i64: 8, 128>}, {transform_indices = @transform_3, window_bounds = array<i64: 4, 8, 128>}]} {
    %c0 = arith.constant 0 : index
    %c0_0 = arith.constant 0 : index
    %c0_1 = arith.constant 0 : index
    %0 = vector.load %arg1[%c0, %c0_0, %c0_1] : memref<4x8x1xf32, #tpu.memory_space<vmem>>, vector<4x8x1xf32>
    %c0_2 = arith.constant 0 : index
    %c0_3 = arith.constant 0 : index
    %1 = vector.load %arg2[%c0_2, %c0_3] : memref<1x128xf32, #tpu.memory_space<vmem>>, vector<1x128xf32>
    %2 = vector.shape_cast %1 : vector<1x128xf32> to vector<128xf32>
    %3 = vector.shape_cast %2 : vector<128xf32> to vector<1x1x128xf32>
    %4 = vector.broadcast %0 : vector<4x8x1xf32> to vector<4x8x128xf32>
    %5 = vector.broadcast %3 : vector<1x1x128xf32> to vector<4x8x128xf32>
    %6 = arith.mulf %4, %5 : vector<4x8x128xf32>
    %c0_4 = arith.constant 0 : index
    %c0_5 = arith.constant 0 : index
    %7 = vector.load %arg3[%c0_4, %c0_5] : memref<8x128xf32, #tpu.memory_space<vmem>>, vector<8x128xf32>
    %8 = vector.shape_cast %7 : vector<8x128xf32> to vector<1x8x128xf32>
    %9 = vector.broadcast %8 : vector<1x8x128xf32> to vector<4x8x128xf32>
    %10 = arith.addf %6, %9 : vector<4x8x128xf32>
    %c0_6 = arith.constant 0 : index
    %c0_7 = arith.constant 0 : index
    %c0_8 = arith.constant 0 : index
    %11 = vector.load %arg4[%c0_6, %c0_7, %c0_8] : memref<4x8x128xf32, #tpu.memory_space<vmem>>, vector<4x8x128xf32>
    tpu.vector_store %arg4[%c0_6, %c0_7, %c0_8], %10 {strides = array<i32>} : memref<4x8x128xf32, #tpu.memory_space<vmem>>, vector<4x8x128xf32>,
    return
  }
  func.func @transform_0(%arg0: i32) -> (i32, i32, i32) {
    %c0_i32 = arith.constant 0 : i32
    %c0_i32_0 = arith.constant 0 : i32
    %c0_i32_1 = arith.constant 0 : i32
    return %arg0, %c0_i32, %c0_i32_0 : i32, i32, i32
  }
  func.func @transform_1(%arg0: i32) -> (i32, i32) {
    %c0_i32 = arith.constant 0 : i32
    %c0_i32_0 = arith.constant 0 : i32
    %c0_i32_1 = arith.constant 0 : i32
    return %c0_i32, %c0_i32_0 : i32, i32
  }
  func.func @transform_2(%arg0: i32) -> (i32, i32) {
    %c0_i32 = arith.constant 0 : i32
    %c0_i32_0 = arith.constant 0 : i32
    %c0_i32_1 = arith.constant 0 : i32
    return %c0_i32, %c0_i32_0 : i32, i32
  }
  func.func @transform_3(%arg0: i32) -> (i32, i32, i32) {
    %c0_i32 = arith.constant 0 : i32
    %c0_i32_0 = arith.constant 0 : i32
    %c0_i32_1 = arith.constant 0 : i32
    return %arg0, %c0_i32, %c0_i32_0 : i32, i32, i32
  }
}

</mosaic_0001>

<llo_original>
// kernel: data_embedding_forward.1
$region0: #{data_embedding_forward.1}
  #allocation0 [shape = 'u32[]', space=smem, size = 0x4, offset = 0x4, fixed_abs, tag = 'smem constant byte address 0x4 - core index']
  #allocation1 [shape = 'u32[72,128]{1,0:T(1,128)}', space=vmem, size = 0x9000, scoped, tag = 'internal scratch']
  %s0 = inlined_call_operand.vmem [shape: f32[8,8,1], index: 0, kind: input, shape index: {}]
  %s1 = inlined_call_operand.vmem [shape: f32[1,128], index: 1, kind: input, shape index: {}]
  %s2 = inlined_call_operand.vmem [shape: f32[8,128], index: 2, kind: input, shape index: {}]
  %s3 = inlined_call_operand.hbm [shape: f32[8,8,128], index: 3, kind: output, shape index: {}]
  %s4 = sld [smem:[#allocation0]]
  $region45: #{data_embedding_forward.1} parent=0
    _
  %s6 = ssub.s32 1, %s4
  %s7 = scalar_select 0, %s6, %s4
  $region1: #{data_embedding_forward.1} parent=0
    #allocation2 [shape = 'u8[32768]{0}', space=vmem, size = 0x8000, scoped, tag = 'output window, operand 0']
    #allocation3 [shape = 's32[2]{0}', space=sflag, size = 0x8, scoped, tag = 'scoped memory for data_embedding_forward.1']
    %8 = vsyncpa [#allocation3], 0
    %s9 = scalar_lea.sflag [#allocation3], 1
    %10 = vsyncpa %s9, 0
    loop: start=0, step=1, limit=4
    $region2: #{data_embedding_forward.1} parent=1 // loop_pre_header
      _
    $region3: #{data_embedding_forward.1} parent=1 // loop_header
      %s12 = sphi 0, %s16
      %p13 = scmp.ge.s32.totalorder %s12, 4
      %s22 = sphi 0, %s24
      %s25 = sphi 0, %s22
      %s26 = sphi 0, %s25
      %s42 = sphi 0, %s26
      %s46 = sphi 0, %s46
      %s48 = sphi 0, %s46
      %s49 = sphi 0, %s48
      %s63 = sphi 0, %s49
      %s67 = sphi 0, %s67
      %s69 = sphi 0, %s67
      %s70 = sphi 0, %s69
      %s84 = sphi 0, %s70
      %s90 = sphi 0, %s92
      %s93 = sphi 0, %s90
      %s94 = sphi 0, %s93
      %s110 = sphi 0, %s94
    $region4: #{data_embedding_forward.1} parent=1 // loop_header_branch
      %15 = sbr.rel (%p13) target = $region8
    $region5: #{data_embedding_forward.1} parent=1 // loop_body
      %s17 = ssub.s32 %s12, 1
      %s18 = ssub.s32 %s12, 2
      %s19 = sadd.s32 %s12, 1
      %s20 = ssub.s32 %s12, %s19
      %p21 = scmp.eq.s32.totalorder %s20, 0
      %s23 = sadd.s32 %s22, 1
      %s24 = scalar_select %p21, %s22, %s23
      %p27 = pneg %p21
      %p28 = scmp.eq.s32.totalorder %s12, 1
      %p29 = por %p27, %p28
      %p30 = scmp.ne.s32.totalorder %s22, %s25
      %p31 = scmp.eq.s32.totalorder %s12, 0
      %p32 = por %p30, %p31
      %p33 = scmp.ne.s32.totalorder %s22, %s25
      %p34 = scmp.eq.s32.totalorder %s17, 1
      %p35 = por %p33, %p34
      %p36 = scmp.ne.s32.totalorder %s25, %s26
      %p37 = scmp.eq.s32.totalorder %s17, 0
      %p38 = por %p36, %p37
      %p39 = scmp.ne.s32.totalorder %s25, %s26
      %p40 = scmp.eq.s32.totalorder %s18, 1
      %p41 = por %p39, %p40
      %p43 = scmp.ne.s32.totalorder %s26, %s42
      %p44 = scmp.eq.s32.totalorder %s18, 0
      %p45 = por %p43, %p44
      %s47 = sadd.s32 %s46, 1
      %p50 = scmp.eq.s32.totalorder %s12, 1
      %p51 = scmp.ne.s32.totalorder %s46, %s48
      %p52 = scmp.eq.s32.totalorder %s12, 0
      %p53 = por %p51, %p52
      %p54 = scmp.ne.s32.totalorder %s46, %s48
      %p55 = scmp.eq.s32.totalorder %s17, 1
      %p56 = por %p54, %p55
      %p57 = scmp.ne.s32.totalorder %s48, %s49
      %p58 = scmp.eq.s32.totalorder %s17, 0
      %p59 = por %p57, %p58
      %p60 = scmp.ne.s32.totalorder %s48, %s49
      %p61 = scmp.eq.s32.totalorder %s18, 1
      %p62 = por %p60, %p61
      %p64 = scmp.ne.s32.totalorder %s49, %s63
      %p65 = scmp.eq.s32.totalorder %s18, 0
      %p66 = por %p64, %p65
      %s68 = sadd.s32 %s67, 1
      %p71 = scmp.eq.s32.totalorder %s12, 1
      %p72 = scmp.ne.s32.totalorder %s67, %s69
      %p73 = scmp.eq.s32.totalorder %s12, 0
      %p74 = por %p72, %p73
      %p75 = scmp.ne.s32.totalorder %s67, %s69
      %p76 = scmp.eq.s32.totalorder %s17, 1
      %p77 = por %p75, %p76
      %p78 = scmp.ne.s32.totalorder %s69, %s70
      %p79 = scmp.eq.s32.totalorder %s17, 0
      %p80 = por %p78, %p79
      %p81 = scmp.ne.s32.totalorder %s69, %s70
      %p82 = scmp.eq.s32.totalorder %s18, 1
      %p83 = por %p81, %p82
      %p85 = scmp.ne.s32.totalorder %s70, %s84
      %p86 = scmp.eq.s32.totalorder %s18, 0
      %p87 = por %p85, %p86
      %s88 = ssub.s32 %s12, %s19
      %p89 = scmp.eq.s32.totalorder %s88, 0
      %s91 = sadd.s32 %s90, 1
      %s92 = scalar_select %p89, %s90, %s91
      %p95 = pneg %p89
      %p96 = scmp.eq.s32.totalorder %s12, 1
      %p97 = por %p95, %p96
      %p98 = scmp.ne.s32.totalorder %s90, %s93
      %p99 = scmp.eq.s32.totalorder %s12, 0
      %p100 = por %p98, %p99
      %p101 = scmp.ne.s32.totalorder %s90, %s93
      %p102 = scmp.eq.s32.totalorder %s17, 1
      %p103 = por %p101, %p102
      %p104 = scmp.ne.s32.totalorder %s93, %s94
      %p105 = scmp.eq.s32.totalorder %s17, 0
      %p106 = por %p104, %p105
      %p107 = scmp.ne.s32.totalorder %s93, %s94
      %p108 = scmp.eq.s32.totalorder %s18, 1
      %p109 = por %p107, %p108
      %p111 = scmp.ne.s32.totalorder %s94, %s110
      %p112 = scmp.eq.s32.totalorder %s18, 0
      %p113 = por %p111, %p112
      %p114 = scmp.le.s32.totalorder 1, %s12
      %p115 = scmp.lt.s32.totalorder %s12, 3
      %p116 = pnand %p114, %p115
      %p117 = pneg %p116
      // Predicated region
      $region9: #{data_embedding_forward.1} parent=5 // pred_check
        _
      $region10: #{data_embedding_forward.1} parent=5 // pred_check_branch
        %119 = sbr.rel (%p116) target = $region12
      $region11: #{data_embedding_forward.1} parent=5 // pred_region
        %s120 = ssub.s32 %s12, 1
        // Predicated region
        $region13: #{data_embedding_forward.1} parent=11 // pred_check
          %p121 = pneg %p59
        $region14: #{data_embedding_forward.1} parent=11 // pred_check_branch
          %123 = sbr.rel (%p121) target = $region16
        $region15: #{data_embedding_forward.1} parent=11 // pred_region
          _
        $region16: #{data_embedding_forward.1} parent=11 // pred_fallthru
          _
        // Predicated region
        $region17: #{data_embedding_forward.1} parent=11 // pred_check
          %p124 = pneg %p80
        $region18: #{data_embedding_forward.1} parent=11 // pred_check_branch
          %126 = sbr.rel (%p124) target = $region20
        $region19: #{data_embedding_forward.1} parent=11 // pred_region
          _
        $region20: #{data_embedding_forward.1} parent=11 // pred_fallthru
          _
      $region12: #{data_embedding_forward.1} parent=5 // pred_fallthru
        _
      %p127 = scmp.lt.s32.totalorder %s12, 2
      // Predicated region
      $region21: #{data_embedding_forward.1} parent=5 // pred_check
        %p128 = pneg %p127
      $region22: #{data_embedding_forward.1} parent=5 // pred_check_branch
        %130 = sbr.rel (%p128) target = $region24
      $region23: #{data_embedding_forward.1} parent=5 // pred_region
        // Predicated region
        $region25: #{data_embedding_forward.1} parent=23 // pred_check
          %p131 = pneg %p32
        $region26: #{data_embedding_forward.1} parent=23 // pred_check_branch
          %133 = sbr.rel (%p131) target = $region28
        $region27: #{data_embedding_forward.1} parent=23 // pred_region
          %s134 = smul.u32 4, %s12
          %p135 = scmp.lt.s32.totalorder %s134, 7
          %s136 = scalar_select %p135, %s134, 7
          %s137 = smul.addr %s136, 8
          %s138 = scalar_lea.vmem %s0, %s137
          %s139 = smul.u32 4, %s12
        $region28: #{data_embedding_forward.1} parent=23 // pred_fallthru
          _
      $region24: #{data_embedding_forward.1} parent=5 // pred_fallthru
        _
      %p140 = scmp.le.s32.totalorder 1, %s12
      %p141 = scmp.lt.s32.totalorder %s12, 3
      %p142 = pnand %p140, %p141
      %p143 = pneg %p142
      // Predicated region
      $region29: #{data_embedding_forward.1} parent=5 // pred_check
        _
      $region30: #{data_embedding_forward.1} parent=5 // pred_check_branch
        %145 = sbr.rel (%p142) target = $region32
      $region31: #{data_embedding_forward.1} parent=5 // pred_region
        %s146 = ssub.s32 %s12, 1
        %s147 = smul.u32 4, %s17
        %p148 = scmp.lt.s32.totalorder %s147, 7
        %s149 = scalar_select %p148, %s147, 7
        %s150 = smul.addr %s149, 8
        %s151 = scalar_lea.vmem %s0, %s150
        %p152 = pneg %p38
        %p153 = pneg %p35
        %p154 = pneg %p59
        %p155 = pneg %p56
        %p156 = pneg %p80
        %p157 = pneg %p77
        %p158 = pneg %p106
        %p159 = pneg %p103
        %s160 = sand.u32 %s93, 1
        %s161 = scalar_lea.sflag [#allocation3], %s160
        %s162 = sand.u32 %s93, 1
        %s163 = smul.addr %s162, 32
        %s164 = scalar_lea.vmem [#allocation2], %s163
        %s165 = smul.u32 4, %s17
        %p166 = scmp.lt.s32.totalorder %s165, 7
        %s167 = scalar_select %p166, %s165, 7
        %s168 = smul.addr %s167, 8
        %s169 = scalar_lea.vmem %s0, %s168
        %s170 = smul.u32 4, %s17
        %s171 = smul.u32 4, %s17
        %v172 = vld [vmem:[%s169] sm:$0xff]
        %v173 = vld [vmem:[%s169 + $0x8] sm:$0xff]
        %v174 = vld [vmem:[%s169 + $0x10] sm:$0xff]
        %v175 = vld [vmem:[%s169 + $0x18] sm:$0xff]
        %v176 = vld [vmem:[%s1] sm:$0x1]
        %178 = vset.pattern.permute.xlu0 0
        %179 = vperm.xlu0 %178, %v172
        %v180 = vpop.permute.xlu0 %179
        %183 = vset.pattern.permute.xlu0 0
        %184 = vperm.xlu0 %183, %v173
        %v185 = vpop.permute.xlu0 %184
        %188 = vset.pattern.permute.xlu0 0
        %189 = vperm.xlu0 %188, %v174
        %v190 = vpop.permute.xlu0 %189
        %193 = vset.pattern.permute.xlu0 0
        %194 = vperm.xlu0 %193, %v175
        %v195 = vpop.permute.xlu0 %194
        %v198 = vperm.slane %v176, 0
        %v200 = vmul.f32 %v180, %v198
        %v201 = vmul.f32 %v185, %v198
        %v202 = vmul.f32 %v190, %v198
        %v203 = vmul.f32 %v195, %v198
        %v204 = vld [vmem:[%s2] sm:$0xff]
        %v205 = vadd.f32 %v200, %v204
        %v206 = vadd.f32 %v201, %v204
        %v207 = vadd.f32 %v202, %v204
        %v208 = vadd.f32 %v203, %v204
        %209 = vst [vmem:[%s164] sm:$0xff] %v205
        %210 = vst [vmem:[%s164 + $0x8] sm:$0xff] %v206
        %211 = vst [vmem:[%s164 + $0x10] sm:$0xff] %v207
        %212 = vst [vmem:[%s164 + $0x18] sm:$0xff] %v208
        %s213 = sand.u32 %s93, 1
        %s214 = scalar_lea.sflag [#allocation3], %s213
        %s215 = sand.u32 %s93, 1
        %s216 = smul.addr %s215, 32
        %s217 = scalar_lea.vmem [#allocation2], %s216
        // Predicated region
        $region33: #{data_embedding_forward.1} parent=31 // pred_check
          %p218 = pneg %p103
        $region34: #{data_embedding_forward.1} parent=31 // pred_check_branch
          %220 = sbr.rel (%p218) target = $region36
        $region35: #{data_embedding_forward.1} parent=31 // pred_region
          %s221 = smul.u32 4, %s17
          %223 = vsyncadd %s214, 0
          %s224 = smul.addr %s221, 8
          %s225 = scalar_lea.hbm %s3, %s224
          %s226 = sshll.u32 %s217, 4
          %s227 = int_to_ptr.vmem [resolvable:$true] %s226
          %s228 = sshll.u32 %s225, 4
          %s229 = int_to_ptr.hbm [resolvable:$true] %s228
          %234 = dma.vmem_to_hbm [thread:$0]  %s227, 512, %s229, %s214, 128, 128, 8
        $region36: #{data_embedding_forward.1} parent=31 // pred_fallthru
          _
      $region32: #{data_embedding_forward.1} parent=5 // pred_fallthru
        _
      %p235 = scmp.le.s32.totalorder 2, %s12
      // Predicated region
      $region37: #{data_embedding_forward.1} parent=5 // pred_check
        %p236 = pneg %p235
      $region38: #{data_embedding_forward.1} parent=5 // pred_check_branch
        %238 = sbr.rel (%p236) target = $region40
      $region39: #{data_embedding_forward.1} parent=5 // pred_region
        %s239 = ssub.s32 %s12, 2
        // Predicated region
        $region41: #{data_embedding_forward.1} parent=39 // pred_check
          %p240 = pneg %p109
        $region42: #{data_embedding_forward.1} parent=39 // pred_check_branch
          %242 = sbr.rel (%p240) target = $region44
        $region43: #{data_embedding_forward.1} parent=39 // pred_region
          %s243 = sand.u32 %s94, 1
          %s244 = scalar_lea.sflag [#allocation3], %s243
          %s245 = sand.u32 %s94, 1
          %s246 = smul.addr %s245, 32
          %s247 = scalar_lea.vmem [#allocation2], %s246
          %249 = dma.done %s244, 512
        $region44: #{data_embedding_forward.1} parent=39 // pred_fallthru
          _
      $region40: #{data_embedding_forward.1} parent=5 // pred_fallthru
        _
    $region6: #{data_embedding_forward.1} parent=1 // loop_footer
      %s16 = sadd.s32 1, %s12
    $region7: #{data_embedding_forward.1} parent=1 // loop_footer_branch
      %11 = sbr.rel target = $region3
    $region8: #{data_embedding_forward.1} parent=1 // loop_exit
      _
    %250 = vsyncpa [#allocation3], 1
    %s251 = scalar_lea.sflag [#allocation3], 1
    %252 = vsyncpa %s251, 1

</llo_original>
